<compile_context>
chip_gen: v7x
topology: tpu7x:2x2x1
jax: 0.10.0
libtpu: 0.0.40
codegen_flags: <defaults>
</compile_context>

<pallas_src>
import functools

import jax
import jax.numpy as jnp
from jax.experimental import pallas as pl
from jax.experimental.pallas import tpu as pltpu

C_IN = 4        # number of input channels (== len(cfg.MODEL.PIXEL_MEAN))
C_FEAT = 32     # backbone output channels (== cfg.MODEL.HEADS.IN_FEAT, small for test)
EPS = 1e-5      # BatchNorm eps


def _choose_tiling(hw, target):
    """Pick a 128-aligned spatial tile <= target and the (possibly padded) spatial extent.

    Never falls back to one giant block: if no clean large divisor of hw exists, hw is
    padded up to a multiple of the tile and the kernel masks the padded lanes in the pool.
    """
    target = max(128, (min(int(target), 131072) // 128) * 128)
    if hw <= target:
        tile = ((hw + 127) // 128) * 128          # single tile, padded to lane multiple
        return tile, tile
    if hw % 128 == 0:
        t = target
        # only accept reasonably large divisors; tiny tiles would re-introduce per-step tax
        while t >= max(128, target // 2):
            if hw % t == 0:
                return t, hw
            t -= 128
    hw_pad = ((hw + target - 1) // target) * target
    return target, hw_pad


def _fused_kernel(x_ref, w_ref, b_ref, scale_ref, shift_ref, feat_ref, pool_ref,
                  *, last_valid):
    s = pl.program_id(1)

    @pl.when(s == 0)
    def _():
        pool_ref[...] = jnp.zeros_like(pool_ref)

    # Backbone stand-in: pointwise (1x1) conv with folded pixel normalization, + ReLU.
    # TODO(synk): build_backbone(cfg) is an external, config-dependent ResNet; it is
    # replaced here by a deterministic pointwise conv + ReLU hot path on the MXU.
    x = x_ref[0]                                                      # (C_IN, tile_hw)
    f = jnp.dot(w_ref[...], x, preferred_element_type=jnp.float32)    # (C_FEAT, tile_hw)
    f = jnp.maximum(f + b_ref[...], 0.0)
    feat_ref[0] = f.astype(feat_ref.dtype)

    # Fused FastGlobalAvgPool2d: per-batch running sum over spatial tiles.
    if last_valid is None:
        pool_ref[0] += jnp.sum(f, axis=1, keepdims=True)              # (C_FEAT, 1)
    else:
        # Spatial axis was zero-padded in the wrapper; ReLU(bias) on padded columns is
        # not necessarily zero, so mask them out of the pool on the final tile.
        is_last = s == pl.num_programs(1) - 1
        col = jax.lax.broadcasted_iota(jnp.int32, f.shape, 1)
        valid = jnp.logical_or(jnp.logical_not(is_last), col < last_valid)
        pool_ref[0] += jnp.sum(jnp.where(valid, f, 0.0), axis=1, keepdims=True)

    # Finalize on the last spatial tile: mean + eval-mode bnneck, both pre-folded into
    # scale/shift in the wrapper:  bn_feat = pool_sum * scale + shift.
    @pl.when(s == pl.num_programs(1) - 1)
    def _():
        pool_ref[0] = pool_ref[0] * scale_ref[...] + shift_ref[...]


def baseline_teacher_forward(images, params, *, tile_hw_target=65536,
                             feature_dtype=jnp.float32):
    """images: (N, C_IN, H, W) float32, NCHW (PyTorch convention)."""
    N, C, H, W = images.shape
    assert C == C_IN
    HW = H * W
    tile_hw, hw_pad = _choose_tiling(HW, tile_hw_target)
    n_s = hw_pad // tile_hw
    last_valid = None if hw_pad == HW else HW - (n_s - 1) * tile_hw

    # Fold (x - mean) / std into the pointwise-conv weights:  f = relu(W' @ x + b')
    inv_std = (1.0 / params["pixel_std"]).reshape(C_IN)               # (C_IN,)
    mean = params["pixel_mean"].reshape(C_IN)                         # (C_IN,)
    w = params["w_backbone"]                                          # (C_IN, C_FEAT)
    w_fold = (w * inv_std[:, None]).T                                 # (C_FEAT, C_IN)
    b_fold = -((mean * inv_std) @ w)[:, None]                         # (C_FEAT, 1)

    # Fold the eval BatchNorm1d (bnneck) + 1/HW pooling factor into (scale, shift):
    #   bn(mean_pool) = (sum/HW - rmean) * g / sqrt(var+eps) + beta = sum*scale + shift
    gamma = params["bn_gamma"].reshape(C_FEAT)
    beta = params["bn_beta"].reshape(C_FEAT)
    rmean = params["bn_mean"].reshape(C_FEAT)
    rvar = params["bn_var"].reshape(C_FEAT)
    bn_scale = gamma * jax.lax.rsqrt(rvar + EPS)
    scale = (bn_scale * (1.0 / HW))[:, None]                          # (C_FEAT, 1)
    shift = (beta - rmean * bn_scale)[:, None]                        # (C_FEAT, 1)

    x3d = images.reshape(N, C_IN, HW)                                 # pure reshape
    if hw_pad != HW:
        x3d = jnp.pad(x3d, ((0, 0), (0, 0), (0, hw_pad - HW)))

    # VMEM budget: double-buffered feature + input blocks, plus headroom; capped for v7x.
    feat_block = C_FEAT * tile_hw * jnp.dtype(feature_dtype).itemsize
    in_block = C_IN * tile_hw * 4
    vmem_limit = int(min(max(2 * (feat_block + in_block) + (8 << 20), 32 << 20), 48 << 20))

    feats_flat, pooled = pl.pallas_call(
        functools.partial(_fused_kernel, last_valid=last_valid),
        out_shape=(
            jax.ShapeDtypeStruct((N, C_FEAT, hw_pad), feature_dtype),  # backbone features
            jax.ShapeDtypeStruct((N, C_FEAT, 1), jnp.float32),         # bnneck (head) feats
        ),
        grid=(N, n_s),
        in_specs=[
            pl.BlockSpec((1, C_IN, tile_hw), lambda n, s: (n, 0, s)),
            pl.BlockSpec((C_FEAT, C_IN), lambda n, s: (0, 0)),
            pl.BlockSpec((C_FEAT, 1), lambda n, s: (0, 0)),
            pl.BlockSpec((C_FEAT, 1), lambda n, s: (0, 0)),
            pl.BlockSpec((C_FEAT, 1), lambda n, s: (0, 0)),
        ],
        out_specs=(
            pl.BlockSpec((1, C_FEAT, tile_hw), lambda n, s: (n, 0, s)),
            pl.BlockSpec((1, C_FEAT, 1), lambda n, s: (n, 0, 0)),
        ),
        compiler_params=pltpu.CompilerParams(
            # NOTE(v7x megacore): batch axis is the parallel axis; if N == 1 the second
            # TensorCore idles — split HW into an outer parallel axis in that regime.
            dimension_semantics=("parallel", "arbitrary"),
            vmem_limit_bytes=vmem_limit,
        ),
    )(x3d, w_fold, b_fold, scale, shift)

    # Backbone features returned in NCHW (matches PyTorch's `features`).
    if hw_pad != HW:
        feats_flat = feats_flat[:, :, :HW]
    features = feats_flat.reshape(N, C_FEAT, H, W)
    head_out = pooled.reshape(N, C_FEAT)

    # TODO(synk): training branch (targets -> classifier logits / KD / triplet losses) not
    # implemented; this reproduces the inference return: (heads(features), features).
    return head_out, features


if __name__ == "__main__":
    key = jax.random.PRNGKey(0)
    k_img, k_w, k_bn = jax.random.split(key, 3)

    N, C, H, W = 2, C_IN, 16, 16
    images = jax.random.normal(k_img, (N, C, H, W), jnp.float32) * 50.0 + 100.0

    params = dict(
        # register_buffer('pixel_mean' / 'pixel_std') — deterministic values
        pixel_mean=jnp.array([[123.675, 116.28, 103.53, 110.00]], jnp.float32),
        pixel_std=jnp.array([[58.395, 57.12, 57.375, 57.00]], jnp.float32),
        # backbone stand-in weight (1x1 conv)
        w_backbone=jax.random.normal(k_w, (C_IN, C_FEAT), jnp.float32) * 0.1,
        # bnneck parameters (fastreid freezes BN bias -> beta = 0)
        bn_gamma=jnp.ones((1, C_FEAT), jnp.float32),
        bn_beta=jnp.zeros((1, C_FEAT), jnp.float32),
        bn_mean=jax.random.normal(k_bn, (1, C_FEAT), jnp.float32) * 0.01,
        bn_var=jnp.ones((1, C_FEAT), jnp.float32),
    )

    head_out, features = jax.block_until_ready(
        jax.jit(baseline_teacher_forward)(images, params)
    )
    assert head_out.shape == (N, C_FEAT)
    assert features.shape == (N, C_FEAT, H, W)

    # pure-JAX reference (unfolded normalization) for a numerical sanity check
    x_norm = (images - params["pixel_mean"].reshape(1, C, 1, 1)) / params["pixel_std"].reshape(1, C, 1, 1)
    feats_ref = jnp.maximum(jnp.einsum("nchw,cf->nfhw", x_norm, params["w_backbone"]), 0.0)
    pooled_ref = feats_ref.mean(axis=(2, 3))
    head_ref = ((pooled_ref - params["bn_mean"]) * jax.lax.rsqrt(params["bn_var"] + EPS)
                * params["bn_gamma"] + params["bn_beta"])
    assert jnp.allclose(features, feats_ref, rtol=1e-4, atol=1e-4)
    assert jnp.allclose(head_out, head_ref, rtol=1e-4, atol=1e-4)

    # also exercise the padded / multi-tile path (HW not a multiple of 128)
    H2, W2 = 24, 12
    images2 = jax.random.normal(k_img, (N, C, H2, W2), jnp.float32) * 50.0 + 100.0
    head2, feats2 = jax.block_until_ready(
        jax.jit(baseline_teacher_forward)(images2, params)
    )
    x2n = (images2 - params["pixel_mean"].reshape(1, C, 1, 1)) / params["pixel_std"].reshape(1, C, 1, 1)
    f2_ref = jnp.maximum(jnp.einsum("nchw,cf->nfhw", x2n, params["w_backbone"]), 0.0)
    p2_ref = f2_ref.mean(axis=(2, 3))
    h2_ref = ((p2_ref - params["bn_mean"]) * jax.lax.rsqrt(params["bn_var"] + EPS)
              * params["bn_gamma"] + params["bn_beta"])
    assert jnp.allclose(feats2, f2_ref, rtol=1e-4, atol=1e-4)
    assert jnp.allclose(head2, h2_ref, rtol=1e-4, atol=1e-4)

    print("KERNEL_OK")
</pallas_src>

<mosaic_0001>
module attributes {stable_mosaic.version = 11 : i64} {
  func.func @_fused_kernel(%arg0: i32, %arg1: i32, %arg2: memref<1x4x256xf32, #tpu.memory_space<vmem>>, %arg3: memref<32x4xf32, #tpu.memory_space<vmem>>, %arg4: memref<32x1xf32, #tpu.memory_space<vmem>>, %arg5: memref<32x1xf32, #tpu.memory_space<vmem>>, %arg6: memref<32x1xf32, #tpu.memory_space<vmem>>, %arg7: memref<1x32x256xf32, #tpu.memory_space<vmem>>, %arg8: memref<1x32x1xf32, #tpu.memory_space<vmem>>) attributes {dimension_semantics = [#tpu.dimension_semantics<parallel>, #tpu.dimension_semantics<arbitrary>], iteration_bounds = array<i64: 2, 1>, scalar_prefetch = 0 : i64, scratch_operands = 0 : i64, tpu.core_type = #tpu.core_type<tc>, window_params = [{transform_indices = @transform_0, window_bounds = array<i64: 1, 4, 256>}, {pipeline_mode = #tpu.pipeline_mode<synchronous>, transform_indices = @transform_1, window_bounds = array<i64: 32, 4>}, {pipeline_mode = #tpu.pipeline_mode<synchronous>, transform_indices = @transform_2, window_bounds = array<i64: 32, 1>}, {pipeline_mode = #tpu.pipeline_mode<synchronous>, transform_indices = @transform_3, window_bounds = array<i64: 32, 1>}, {pipeline_mode = #tpu.pipeline_mode<synchronous>, transform_indices = @transform_4, window_bounds = array<i64: 32, 1>}, {transform_indices = @transform_5, window_bounds = array<i64: 1, 32, 256>}, {transform_indices = @transform_6, window_bounds = array<i64: 1, 32, 1>}]} {
    %c0_i32 = arith.constant 0 : i32
    %0 = arith.cmpi eq, %arg1, %c0_i32 : i32
    %1 = arith.extui %0 : i1 to i32
    %c0_i32_0 = arith.constant 0 : i32
    %2 = arith.cmpi ne, %1, %c0_i32_0 : i32
    scf.if %2 {
      %cst_20 = arith.constant 0.000000e+00 : f32
      %26 = vector.broadcast %cst_20 : f32 to vector<1x32x1xf32>
      %c0_21 = arith.constant 0 : index
      %c0_22 = arith.constant 0 : index
      %c0_23 = arith.constant 0 : index
      %27 = vector.load %arg8[%c0_21, %c0_22, %c0_23] : memref<1x32x1xf32, #tpu.memory_space<vmem>>, vector<1x32x1xf32>
      tpu.vector_store %arg8[%c0_21, %c0_22, %c0_23], %26 {strides = array<i32>} : memref<1x32x1xf32, #tpu.memory_space<vmem>>, vector<1x32x1xf32>,
    } else {
    }
    %c0 = arith.constant 0 : index
    %c0_1 = arith.constant 0 : index
    %c0_2 = arith.constant 0 : index
    %3 = vector.load %arg2[%c0, %c0_1, %c0_2] : memref<1x4x256xf32, #tpu.memory_space<vmem>>, vector<1x4x256xf32>
    %4 = vector.shape_cast %3 : vector<1x4x256xf32> to vector<4x256xf32>
    %c0_3 = arith.constant 0 : index
    %c0_4 = arith.constant 0 : index
    %5 = vector.load %arg3[%c0_3, %c0_4] : memref<32x4xf32, #tpu.memory_space<vmem>>, vector<32x4xf32>
    %cst = arith.constant dense<0.000000e+00> : vector<32x256xf32>
    %6 = tpu.matmul %5, %4, %cst {dimension_numbers = #tpu.dot_dimension_numbers<[1], [0], [0], [1], [0, 0, 1, 1], [], []>} : vector<32x4xf32>, vector<4x256xf32>, vector<32x256xf32> -> vector<32x256xf32>
    %c0_5 = arith.constant 0 : index
    %c0_6 = arith.constant 0 : index
    %7 = vector.load %arg4[%c0_5, %c0_6] : memref<32x1xf32, #tpu.memory_space<vmem>>, vector<32x1xf32>
    %8 = vector.broadcast %7 : vector<32x1xf32> to vector<32x256xf32>
    %9 = arith.addf %6, %8 : vector<32x256xf32>
    %cst_7 = arith.constant 0.000000e+00 : f32
    %10 = vector.broadcast %cst_7 : f32 to vector<32x256xf32>
    %11 = arith.maximumf %9, %10 : vector<32x256xf32>
    %c0_8 = arith.constant 0 : index
    %c0_9 = arith.constant 0 : index
    %c0_10 = arith.constant 0 : index
    %12 = vector.load %arg7[%c0_8, %c0_9, %c0_10] : memref<1x32x256xf32, #tpu.memory_space<vmem>>, vector<1x32x256xf32>
    %13 = vector.shape_cast %12 : vector<1x32x256xf32> to vector<32x256xf32>
    %14 = vector.shape_cast %11 : vector<32x256xf32> to vector<1x32x256xf32>
    tpu.vector_store %arg7[%c0_8, %c0_9, %c0_10], %14 {strides = array<i32>} : memref<1x32x256xf32, #tpu.memory_space<vmem>>, vector<1x32x256xf32>,
    %c0_11 = arith.constant 0 : index
    %c0_12 = arith.constant 0 : index
    %c0_13 = arith.constant 0 : index
    %15 = vector.load %arg8[%c0_11, %c0_12, %c0_13] : memref<1x32x1xf32, #tpu.memory_space<vmem>>, vector<1x32x1xf32>
    %16 = vector.shape_cast %15 : vector<1x32x1xf32> to vector<32x1xf32>
    %cst_14 = arith.constant dense<0.000000e+00> : vector<32xf32>
    %17 = vector.multi_reduction <add>, %11, %cst_14 [1] : vector<32x256xf32> to vector<32xf32>
    %18 = vector.shape_cast %17 : vector<32xf32> to vector<32x1xf32>
    %19 = arith.addf %16, %18 : vector<32x1xf32>
    %c0_15 = arith.constant 0 : index
    %c0_16 = arith.constant 0 : index
    %c0_17 = arith.constant 0 : index
    %20 = vector.load %arg8[%c0_15, %c0_16, %c0_17] : memref<1x32x1xf32, #tpu.memory_space<vmem>>, vector<1x32x1xf32>
    %21 = vector.shape_cast %20 : vector<1x32x1xf32> to vector<32x1xf32>
    %22 = vector.shape_cast %19 : vector<32x1xf32> to vector<1x32x1xf32>
    tpu.vector_store %arg8[%c0_15, %c0_16, %c0_17], %22 {strides = array<i32>} : memref<1x32x1xf32, #tpu.memory_space<vmem>>, vector<1x32x1xf32>,
    %c0_i32_18 = arith.constant 0 : i32
    %23 = arith.cmpi eq, %arg1, %c0_i32_18 : i32
    %24 = arith.extui %23 : i1 to i32
    %c0_i32_19 = arith.constant 0 : i32
    %25 = arith.cmpi ne, %24, %c0_i32_19 : i32
    scf.if %25 {
      %c0_20 = arith.constant 0 : index
      %c0_21 = arith.constant 0 : index
      %c0_22 = arith.constant 0 : index
      %26 = vector.load %arg8[%c0_20, %c0_21, %c0_22] : memref<1x32x1xf32, #tpu.memory_space<vmem>>, vector<1x32x1xf32>
      %27 = vector.shape_cast %26 : vector<1x32x1xf32> to vector<32x1xf32>
      %c0_23 = arith.constant 0 : index
      %c0_24 = arith.constant 0 : index
      %28 = vector.load %arg5[%c0_23, %c0_24] : memref<32x1xf32, #tpu.memory_space<vmem>>, vector<32x1xf32>
      %29 = arith.mulf %27, %28 : vector<32x1xf32>
      %c0_25 = arith.constant 0 : index
      %c0_26 = arith.constant 0 : index
      %30 = vector.load %arg6[%c0_25, %c0_26] : memref<32x1xf32, #tpu.memory_space<vmem>>, vector<32x1xf32>
      %31 = arith.addf %29, %30 : vector<32x1xf32>
      %c0_27 = arith.constant 0 : index
      %c0_28 = arith.constant 0 : index
      %c0_29 = arith.constant 0 : index
      %32 = vector.load %arg8[%c0_27, %c0_28, %c0_29] : memref<1x32x1xf32, #tpu.memory_space<vmem>>, vector<1x32x1xf32>
      %33 = vector.shape_cast %32 : vector<1x32x1xf32> to vector<32x1xf32>
      %34 = vector.shape_cast %31 : vector<32x1xf32> to vector<1x32x1xf32>
      tpu.vector_store %arg8[%c0_27, %c0_28, %c0_29], %34 {strides = array<i32>} : memref<1x32x1xf32, #tpu.memory_space<vmem>>, vector<1x32x1xf32>,
    } else {
    }
    return
  }
  func.func @transform_0(%arg0: i32, %arg1: i32) -> (i32, i32, i32) {
    %c0_i32 = arith.constant 0 : i32
    %c0_i32_0 = arith.constant 0 : i32
    return %arg0, %c0_i32, %arg1 : i32, i32, i32
  }
  func.func @transform_1(%arg0: i32, %arg1: i32) -> (i32, i32) {
    %c0_i32 = arith.constant 0 : i32
    %c0_i32_0 = arith.constant 0 : i32
    %c0_i32_1 = arith.constant 0 : i32
    return %c0_i32, %c0_i32_0 : i32, i32
  }
  func.func @transform_2(%arg0: i32, %arg1: i32) -> (i32, i32) {
    %c0_i32 = arith.constant 0 : i32
    %c0_i32_0 = arith.constant 0 : i32
    %c0_i32_1 = arith.constant 0 : i32
    return %c0_i32, %c0_i32_0 : i32, i32
  }
  func.func @transform_3(%arg0: i32, %arg1: i32) -> (i32, i32) {
    %c0_i32 = arith.constant 0 : i32
    %c0_i32_0 = arith.constant 0 : i32
    %c0_i32_1 = arith.constant 0 : i32
    return %c0_i32, %c0_i32_0 : i32, i32
  }
  func.func @transform_4(%arg0: i32, %arg1: i32) -> (i32, i32) {
    %c0_i32 = arith.constant 0 : i32
    %c0_i32_0 = arith.constant 0 : i32
    %c0_i32_1 = arith.constant 0 : i32
    return %c0_i32, %c0_i32_0 : i32, i32
  }
  func.func @transform_5(%arg0: i32, %arg1: i32) -> (i32, i32, i32) {
    %c0_i32 = arith.constant 0 : i32
    %c0_i32_0 = arith.constant 0 : i32
    return %arg0, %c0_i32, %arg1 : i32, i32, i32
  }
  func.func @transform_6(%arg0: i32, %arg1: i32) -> (i32, i32, i32) {
    %c0_i32 = arith.constant 0 : i32
    %c0_i32_0 = arith.constant 0 : i32
    %c0_i32_1 = arith.constant 0 : i32
    return %arg0, %c0_i32, %c0_i32_0 : i32, i32, i32
  }
}

</mosaic_0001>

<llo_original>
// kernel: baseline_teacher_forward.1
$region0: #{baseline_teacher_forward.1}
  #allocation0 [shape = 'u32[]', space=smem, size = 0x4, offset = 0x4, fixed_abs, tag = 'smem constant byte address 0x4 - core index']
  #allocation1 [shape = 'u32[144,128]{1,0:T(1,128)}', space=vmem, size = 0x12000, scoped, tag = 'internal scratch']
  %s0 = inlined_call_operand.vmem [shape: f32[2,4,256], index: 0, kind: input, shape index: {}]
  %s1 = inlined_call_operand.vmem [shape: f32[32,4], index: 1, kind: input, shape index: {}]
  %s2 = inlined_call_operand.vmem [shape: f32[32,1], index: 2, kind: input, shape index: {}]
  %s3 = inlined_call_operand.vmem [shape: f32[32,1], index: 3, kind: input, shape index: {}]
  %s4 = inlined_call_operand.vmem [shape: f32[32,1], index: 4, kind: input, shape index: {}]
  %s5 = inlined_call_operand.vmem [shape: f32[2,32,256], index: 5, kind: output, shape index: {0}]
  %s6 = inlined_call_operand.vmem [shape: f32[2,32,1], index: 6, kind: output, shape index: {1}]
  %7 = xla_tuple %s5, %s6
  %s8 = sld [smem:[#allocation0]]
  $region69: #{baseline_teacher_forward.1} parent=0
    _
  %s10 = ssub.s32 1, %s8
  %s11 = scalar_select 0, %s10, %s8
  loop: start=0, step=1, limit=4
  $region2: #{baseline_teacher_forward.1} parent=0 // loop_pre_header
    _
  $region3: #{baseline_teacher_forward.1} parent=0 // loop_header
    %s13 = sphi 0, %s17
    %p14 = scmp.ge.s32.totalorder %s13, 4
    %s20 = sphi 0, %s32
    %s21 = sphi 0, %s28
    %s22 = sphi 0, %s20
    %s23 = sphi 0, %s21
    %s24 = sphi 0, %s22
    %s25 = sphi 0, %s23
    %s37 = sphi 0, %s39
    %s40 = sphi 0, %s37
    %s41 = sphi 0, %s40
    %s57 = sphi 0, %s41
    %s61 = sphi 0, %s61
    %s63 = sphi 0, %s61
    %s64 = sphi 0, %s63
    %s78 = sphi 0, %s64
    %s82 = sphi 0, %s82
    %s84 = sphi 0, %s82
    %s85 = sphi 0, %s84
    %s99 = sphi 0, %s85
    %s103 = sphi 0, %s103
    %s105 = sphi 0, %s103
    %s106 = sphi 0, %s105
    %s120 = sphi 0, %s106
    %s124 = sphi 0, %s124
    %s126 = sphi 0, %s124
    %s127 = sphi 0, %s126
    %s141 = sphi 0, %s127
    %s149 = sphi 0, %s151
    %s152 = sphi 0, %s149
    %s153 = sphi 0, %s152
    %s169 = sphi 0, %s153
    %s175 = sphi 0, %s177
    %s178 = sphi 0, %s175
    %s179 = sphi 0, %s178
    %s195 = sphi 0, %s179
  $region4: #{baseline_teacher_forward.1} parent=0 // loop_header_branch
    %16 = sbr.rel (%p14) target = $region8
  $region5: #{baseline_teacher_forward.1} parent=0 // loop_body
    %s18 = ssub.s32 %s13, 1
    %s19 = ssub.s32 %s13, 2
    %s26 = sadd.s32 1, %s21
    %p27 = scmp.ge.s32.totalorder %s26, 1
    %s28 = scalar_select %p27, 0, %s26
    %s29 = sadd.s32 1, %s20
    %s30 = scalar_select %p27, %s29, %s20
    %p31 = scmp.ge.s32.totalorder %s30, 2
    %s32 = scalar_select %p31, 0, %s30
    %s33 = ssub.s32 %s20, %s32
    %s34 = ssub.s32 %s21, %s28
    %s35 = sor.u32 %s33, %s34
    %p36 = scmp.eq.s32.totalorder %s35, 0
    %s38 = sadd.s32 %s37, 1
    %s39 = scalar_select %p36, %s37, %s38
    %p42 = pneg %p36
    %p43 = scmp.eq.s32.totalorder %s13, 1
    %p44 = por %p42, %p43
    %p45 = scmp.ne.s32.totalorder %s37, %s40
    %p46 = scmp.eq.s32.totalorder %s13, 0
    %p47 = por %p45, %p46
    %p48 = scmp.ne.s32.totalorder %s37, %s40
    %p49 = scmp.eq.s32.totalorder %s18, 1
    %p50 = por %p48, %p49
    %p51 = scmp.ne.s32.totalorder %s40, %s41
    %p52 = scmp.eq.s32.totalorder %s18, 0
    %p53 = por %p51, %p52
    %p54 = scmp.ne.s32.totalorder %s40, %s41
    %p55 = scmp.eq.s32.totalorder %s19, 1
    %p56 = por %p54, %p55
    %p58 = scmp.ne.s32.totalorder %s41, %s57
    %p59 = scmp.eq.s32.totalorder %s19, 0
    %p60 = por %p58, %p59
    %s62 = sadd.s32 %s61, 1
    %p65 = scmp.eq.s32.totalorder %s13, 1
    %p66 = scmp.ne.s32.totalorder %s61, %s63
    %p67 = scmp.eq.s32.totalorder %s13, 0
    %p68 = por %p66, %p67
    %p69 = scmp.ne.s32.totalorder %s61, %s63
    %p70 = scmp.eq.s32.totalorder %s18, 1
    %p71 = por %p69, %p70
    %p72 = scmp.ne.s32.totalorder %s63, %s64
    %p73 = scmp.eq.s32.totalorder %s18, 0
    %p74 = por %p72, %p73
    %p75 = scmp.ne.s32.totalorder %s63, %s64
    %p76 = scmp.eq.s32.totalorder %s19, 1
    %p77 = por %p75, %p76
    %p79 = scmp.ne.s32.totalorder %s64, %s78
    %p80 = scmp.eq.s32.totalorder %s19, 0
    %p81 = por %p79, %p80
    %s83 = sadd.s32 %s82, 1
    %p86 = scmp.eq.s32.totalorder %s13, 1
    %p87 = scmp.ne.s32.totalorder %s82, %s84
    %p88 = scmp.eq.s32.totalorder %s13, 0
    %p89 = por %p87, %p88
    %p90 = scmp.ne.s32.totalorder %s82, %s84
    %p91 = scmp.eq.s32.totalorder %s18, 1
    %p92 = por %p90, %p91
    %p93 = scmp.ne.s32.totalorder %s84, %s85
    %p94 = scmp.eq.s32.totalorder %s18, 0
    %p95 = por %p93, %p94
    %p96 = scmp.ne.s32.totalorder %s84, %s85
    %p97 = scmp.eq.s32.totalorder %s19, 1
    %p98 = por %p96, %p97
    %p100 = scmp.ne.s32.totalorder %s85, %s99
    %p101 = scmp.eq.s32.totalorder %s19, 0
    %p102 = por %p100, %p101
    %s104 = sadd.s32 %s103, 1
    %p107 = scmp.eq.s32.totalorder %s13, 1
    %p108 = scmp.ne.s32.totalorder %s103, %s105
    %p109 = scmp.eq.s32.totalorder %s13, 0
    %p110 = por %p108, %p109
    %p111 = scmp.ne.s32.totalorder %s103, %s105
    %p112 = scmp.eq.s32.totalorder %s18, 1
    %p113 = por %p111, %p112
    %p114 = scmp.ne.s32.totalorder %s105, %s106
    %p115 = scmp.eq.s32.totalorder %s18, 0
    %p116 = por %p114, %p115
    %p117 = scmp.ne.s32.totalorder %s105, %s106
    %p118 = scmp.eq.s32.totalorder %s19, 1
    %p119 = por %p117, %p118
    %p121 = scmp.ne.s32.totalorder %s106, %s120
    %p122 = scmp.eq.s32.totalorder %s19, 0
    %p123 = por %p121, %p122
    %s125 = sadd.s32 %s124, 1
    %p128 = scmp.eq.s32.totalorder %s13, 1
    %p129 = scmp.ne.s32.totalorder %s124, %s126
    %p130 = scmp.eq.s32.totalorder %s13, 0
    %p131 = por %p129, %p130
    %p132 = scmp.ne.s32.totalorder %s124, %s126
    %p133 = scmp.eq.s32.totalorder %s18, 1
    %p134 = por %p132, %p133
    %p135 = scmp.ne.s32.totalorder %s126, %s127
    %p136 = scmp.eq.s32.totalorder %s18, 0
    %p137 = por %p135, %p136
    %p138 = scmp.ne.s32.totalorder %s126, %s127
    %p139 = scmp.eq.s32.totalorder %s19, 1
    %p140 = por %p138, %p139
    %p142 = scmp.ne.s32.totalorder %s127, %s141
    %p143 = scmp.eq.s32.totalorder %s19, 0
    %p144 = por %p142, %p143
    %s145 = ssub.s32 %s20, %s32
    %s146 = ssub.s32 %s21, %s28
    %s147 = sor.u32 %s145, %s146
    %p148 = scmp.eq.s32.totalorder %s147, 0
    %s150 = sadd.s32 %s149, 1
    %s151 = scalar_select %p148, %s149, %s150
    %p154 = pneg %p148
    %p155 = scmp.eq.s32.totalorder %s13, 1
    %p156 = por %p154, %p155
    %p157 = scmp.ne.s32.totalorder %s149, %s152
    %p158 = scmp.eq.s32.totalorder %s13, 0
    %p159 = por %p157, %p158
    %p160 = scmp.ne.s32.totalorder %s149, %s152
    %p161 = scmp.eq.s32.totalorder %s18, 1
    %p162 = por %p160, %p161
    %p163 = scmp.ne.s32.totalorder %s152, %s153
    %p164 = scmp.eq.s32.totalorder %s18, 0
    %p165 = por %p163, %p164
    %p166 = scmp.ne.s32.totalorder %s152, %s153
    %p167 = scmp.eq.s32.totalorder %s19, 1
    %p168 = por %p166, %p167
    %p170 = scmp.ne.s32.totalorder %s153, %s169
    %p171 = scmp.eq.s32.totalorder %s19, 0
    %p172 = por %p170, %p171
    %s173 = ssub.s32 %s20, %s32
    %p174 = scmp.eq.s32.totalorder %s173, 0
    %s176 = sadd.s32 %s175, 1
    %s177 = scalar_select %p174, %s175, %s176
    %p180 = pneg %p174
    %p181 = scmp.eq.s32.totalorder %s13, 1
    %p182 = por %p180, %p181
    %p183 = scmp.ne.s32.totalorder %s175, %s178
    %p184 = scmp.eq.s32.totalorder %s13, 0
    %p185 = por %p183, %p184
    %p186 = scmp.ne.s32.totalorder %s175, %s178
    %p187 = scmp.eq.s32.totalorder %s18, 1
    %p188 = por %p186, %p187
    %p189 = scmp.ne.s32.totalorder %s178, %s179
    %p190 = scmp.eq.s32.totalorder %s18, 0
    %p191 = por %p189, %p190
    %p192 = scmp.ne.s32.totalorder %s178, %s179
    %p193 = scmp.eq.s32.totalorder %s19, 1
    %p194 = por %p192, %p193
    %p196 = scmp.ne.s32.totalorder %s179, %s195
    %p197 = scmp.eq.s32.totalorder %s19, 0
    %p198 = por %p196, %p197
    %p199 = scmp.le.s32.totalorder 1, %s13
    %p200 = scmp.lt.s32.totalorder %s13, 3
    %p201 = pnand %p199, %p200
    %p202 = pneg %p201
    // Predicated region
    $region9: #{baseline_teacher_forward.1} parent=5 // pred_check
      _
    $region10: #{baseline_teacher_forward.1} parent=5 // pred_check_branch
      %204 = sbr.rel (%p201) target = $region12
    $region11: #{baseline_teacher_forward.1} parent=5 // pred_region
      %s205 = ssub.s32 %s13, 1
      // Predicated region
      $region13: #{baseline_teacher_forward.1} parent=11 // pred_check
        %p206 = pneg %p74
      $region14: #{baseline_teacher_forward.1} parent=11 // pred_check_branch
        %208 = sbr.rel (%p206) target = $region16
      $region15: #{baseline_teacher_forward.1} parent=11 // pred_region
        _
      $region16: #{baseline_teacher_forward.1} parent=11 // pred_fallthru
        _
      // Predicated region
      $region17: #{baseline_teacher_forward.1} parent=11 // pred_check
        %p209 = pneg %p95
      $region18: #{baseline_teacher_forward.1} parent=11 // pred_check_branch
        %211 = sbr.rel (%p209) target = $region20
      $region19: #{baseline_teacher_forward.1} parent=11 // pred_region
        _
      $region20: #{baseline_teacher_forward.1} parent=11 // pred_fallthru
        _
      // Predicated region
      $region21: #{baseline_teacher_forward.1} parent=11 // pred_check
        %p212 = pneg %p116
      $region22: #{baseline_teacher_forward.1} parent=11 // pred_check_branch
        %214 = sbr.rel (%p212) target = $region24
      $region23: #{baseline_teacher_forward.1} parent=11 // pred_region
        _
      $region24: #{baseline_teacher_forward.1} parent=11 // pred_fallthru
        _
      // Predicated region
      $region25: #{baseline_teacher_forward.1} parent=11 // pred_check
        %p215 = pneg %p137
      $region26: #{baseline_teacher_forward.1} parent=11 // pred_check_branch
        %217 = sbr.rel (%p215) target = $region28
      $region27: #{baseline_teacher_forward.1} parent=11 // pred_region
        _
      $region28: #{baseline_teacher_forward.1} parent=11 // pred_fallthru
        _
    $region12: #{baseline_teacher_forward.1} parent=5 // pred_fallthru
      _
    %p218 = scmp.lt.s32.totalorder %s13, 2
    // Predicated region
    $region29: #{baseline_teacher_forward.1} parent=5 // pred_check
      %p219 = pneg %p218
    $region30: #{baseline_teacher_forward.1} parent=5 // pred_check_branch
      %221 = sbr.rel (%p219) target = $region32
    $region31: #{baseline_teacher_forward.1} parent=5 // pred_region
      // Predicated region
      $region33: #{baseline_teacher_forward.1} parent=31 // pred_check
        %p222 = pneg %p47
      $region34: #{baseline_teacher_forward.1} parent=31 // pred_check_branch
        %224 = sbr.rel (%p222) target = $region36
      $region35: #{baseline_teacher_forward.1} parent=31 // pred_region
        %s225 = smul.u32 2, %s21
        %p226 = scmp.lt.s32.totalorder %s20, 1
        %s227 = scalar_select %p226, %s20, 1
        %p228 = scmp.lt.s32.totalorder %s225, 1
        %s229 = scalar_select %p228, %s225, 1
        %s230 = smul.addr %s227, 2
        %s231 = sadd.s32 %s229, %s230
        %s232 = smul.addr %s231, 4
        %s233 = scalar_lea.vmem %s0, %s232
        %s234 = smul.u32 2, %s21
      $region36: #{baseline_teacher_forward.1} parent=31 // pred_fallthru
        _
    $region32: #{baseline_teacher_forward.1} parent=5 // pred_fallthru
      _
    %p235 = scmp.le.s32.totalorder 1, %s13
    %p236 = scmp.lt.s32.totalorder %s13, 3
    %p237 = pnand %p235, %p236
    %p238 = pneg %p237
    // Predicated region
    $region37: #{baseline_teacher_forward.1} parent=5 // pred_check
      _
    $region38: #{baseline_teacher_forward.1} parent=5 // pred_check_branch
      %240 = sbr.rel (%p237) target = $region40
    $region39: #{baseline_teacher_forward.1} parent=5 // pred_region
      %s241 = ssub.s32 %s13, 1
      %s242 = smul.u32 2, %s23
      %p243 = scmp.lt.s32.totalorder %s22, 1
      %s244 = scalar_select %p243, %s22, 1
      %p245 = scmp.lt.s32.totalorder %s242, 1
      %s246 = scalar_select %p245, %s242, 1
      %s247 = smul.addr %s244, 2
      %s248 = sadd.s32 %s246, %s247
      %s249 = smul.addr %s248, 4
      %s250 = scalar_lea.vmem %s0, %s249
      %p251 = pneg %p53
      %p252 = pneg %p50
      %p253 = pneg %p74
      %p254 = pneg %p71
      %p255 = pneg %p95
      %p256 = pneg %p92
      %p257 = pneg %p116
      %p258 = pneg %p113
      %p259 = pneg %p137
      %p260 = pneg %p134
      %p261 = pneg %p165
      %p262 = pneg %p162
      %s263 = smul.u32 2, %s23
      %p264 = scmp.lt.s32.totalorder %s22, 1
      %s265 = scalar_select %p264, %s22, 1
      %p266 = scmp.lt.s32.totalorder %s263, 1
      %s267 = scalar_select %p266, %s263, 1
      %s268 = smul.addr %s265, 8
      %s269 = sadd.s32 %s267, %s268
      %s270 = smul.addr %s269, 8
      %s271 = scalar_lea.vmem %s5, %s270
      %p272 = pneg %p191
      %p273 = pneg %p188
      %p274 = scmp.lt.s32.totalorder %s22, 1
      %s275 = scalar_select %p274, %s22, 1
      %s276 = smul.addr %s275, 4
      %s277 = smul.addr %s276, 8
      %s278 = scalar_lea.vmem %s6, %s277
      %s279 = smul.u32 2, %s23
      %p280 = scmp.lt.s32.totalorder %s22, 1
      %s281 = scalar_select %p280, %s22, 1
      %p282 = scmp.lt.s32.totalorder %s279, 1
      %s283 = scalar_select %p282, %s279, 1
      %s284 = smul.addr %s281, 2
      %s285 = sadd.s32 %s283, %s284
      %s286 = smul.addr %s285, 4
      %s287 = scalar_lea.vmem %s0, %s286
      %s288 = smul.u32 2, %s23
      %s289 = smul.u32 2, %s23
      %p290 = scmp.lt.s32.totalorder %s22, 1
      %s291 = scalar_select %p290, %s22, 1
      %p292 = scmp.lt.s32.totalorder %s289, 1
      %s293 = scalar_select %p292, %s289, 1
      %s294 = smul.addr %s291, 8
      %s295 = sadd.s32 %s293, %s294
      %s296 = smul.addr %s295, 8
      %s297 = scalar_lea.vmem %s5, %s296
      %s298 = smul.u32 2, %s23
      %p299 = scmp.lt.s32.totalorder %s22, 1
      %s300 = scalar_select %p299, %s22, 1
      %s301 = smul.addr %s300, 4
      %s302 = smul.addr %s301, 8
      %s303 = scalar_lea.vmem %s6, %s302
      %p304 = scmp.eq.s32.totalorder %s23, 0
      // Predicated region
      $region41: #{baseline_teacher_forward.1} parent=39 // pred_check
        %p305 = pneg %p304
      $region42: #{baseline_teacher_forward.1} parent=39 // pred_check_branch
        %307 = sbr.rel (%p305) target = $region44
      $region43: #{baseline_teacher_forward.1} parent=39 // pred_region
        %vm308 = vcmask 7168
        %309 = vst.msk [vmem:[%s303] sm:$0xff] %vm308, 0.0
        %310 = vst.msk [vmem:[%s303 + $0x8] sm:$0xff] %vm308, 0.0
        %311 = vst.msk [vmem:[%s303 + $0x10] sm:$0xff] %vm308, 0.0
        %312 = vst.msk [vmem:[%s303 + $0x18] sm:$0xff] %vm308, 0.0
      $region44: #{baseline_teacher_forward.1} parent=39 // pred_fallthru
        _
      %v313 = vld [vmem:[%s287] sm:$0xff]
      %v314 = vld [vmem:[%s1] sm:$0xff]
      %v315 = vld [vmem:[%s1 + $0x8] sm:$0xff]
      %v316 = vld [vmem:[%s1 + $0x10] sm:$0xff]
      %v317 = vld [vmem:[%s1 + $0x18] sm:$0xff]
      %v318 = vld [vmem:[%s2] sm:$0xff]
      %v319 = vld [vmem:[%s2 + $0x8] sm:$0xff]
      %v320 = vld [vmem:[%s2 + $0x10] sm:$0xff]
      %v321 = vld [vmem:[%s2 + $0x18] sm:$0xff]
      %323 = vset.pattern.permute.xlu0 0
      %324 = vperm.xlu0 %323, %v318
      %v325 = vpop.permute.xlu0 %324
      %328 = vset.pattern.permute.xlu0 0
      %329 = vperm.xlu0 %328, %v319
      %v330 = vpop.permute.xlu0 %329
      %333 = vset.pattern.permute.xlu0 0
      %334 = vperm.xlu0 %333, %v320
      %v335 = vpop.permute.xlu0 %334
      %338 = vset.pattern.permute.xlu0 0
      %339 = vperm.xlu0 %338, %v321
      %v340 = vpop.permute.xlu0 %339
      %v343 = vcombine.high %v313, %v313
      %vm344 = vcmask 31744
      %v346 = vsel %vm344, %v314, 0
      %v349 = vsel %vm344, %v315, 0
      %v352 = vsel %vm344, %v316, 0
      %v355 = vsel %vm344, %v317, 0
      %vm357 = vcmask 1043456
      %v358 = vsel %vm357, %v313, 0
      %v360 = vsel %vm357, %v343, 0
      %362 = vmatprep.subr.mxu0 %v360
      %363 = vmatpush1.msra.mxu0 %v358
      %364 = vmatprep.subr.mxu0 0.0
      %365 = vmatpush1.msra.mxu0 0.0
      %366 = vmatprep.subr.mxu0 0.0
      %367 = vmatpush1.msra.mxu0 0.0
      %368 = vmatprep.subr.mxu0 0.0
      %369 = vmatpush1.msra.mxu0 0.0
      %370 = vmatprep.subr.mxu0 0.0
      %371 = vmatpush1.msra.mxu0 0.0
      %372 = vmatprep.subr.mxu0 0.0
      %373 = vmatpush1.msra.mxu0 0.0
      %374 = vmatprep.subr.mxu0 0.0
      %375 = vmatpush1.msra.mxu0 0.0
      %376 = vmatprep.subr.mxu0 0.0
      %377 = vmatpush1.msra.mxu0 0.0
      %378 = vmatprep.subr.mxu0 0.0
      %379 = vmatpush1.msra.mxu0 0.0
      %380 = vmatprep.subr.mxu0 0.0
      %381 = vmatpush1.msra.mxu0 0.0
      %382 = vmatprep.subr.mxu0 0.0
      %383 = vmatpush1.msra.mxu0 0.0
      %384 = vmatprep.subr.mxu0 0.0
      %385 = vmatpush1.msra.mxu0 0.0
      %386 = vmatprep.subr.mxu0 0.0
      %387 = vmatpush1.msra.mxu0 0.0
      %388 = vmatprep.subr.mxu0 0.0
      %389 = vmatpush1.msra.mxu0 0.0
      %390 = vmatprep.subr.mxu0 0.0
      %391 = vmatpush1.msra.mxu0 0.0
      %392 = vmatprep.subr.mxu0 0.0
      %393 = vmatpush1.msra.mxu0 0.0
      %394 = vmatprep.subr.mxu0 0.0
      %395 = vmatpush1.msra.mxu0 0.0
      %396 = vmatprep.subr.mxu0 0.0
      %397 = vmatpush1.msra.mxu0 0.0
      %398 = vmatprep.subr.mxu0 0.0
      %399 = vmatpush1.msra.mxu0 0.0
      %400 = vmatprep.subr.mxu0 0.0
      %401 = vmatpush1.msra.mxu0 0.0
      %402 = vmatprep.subr.mxu0 0.0
      %403 = vmatpush1.msra.mxu0 0.0
      %404 = vmatprep.subr.mxu0 0.0
      %405 = vmatpush1.msra.mxu0 0.0
      %406 = vmatprep.subr.mxu0 0.0
      %407 = vmatpush1.msra.mxu0 0.0
      %408 = vmatprep.subr.mxu0 0.0
      %409 = vmatpush1.msra.mxu0 0.0
      %410 = vmatprep.subr.mxu0 0.0
      %411 = vmatpush1.msra.mxu0 0.0
      %412 = vmatprep.subr.mxu0 0.0
      %413 = vmatpush1.msra.mxu0 0.0
      %414 = vmatprep.subr.mxu0 0.0
      %415 = vmatpush1.msra.mxu0 0.0
      %416 = vmatprep.subr.mxu0 0.0
      %417 = vmatpush1.msra.mxu0 0.0
      %418 = vmatprep.subr.mxu0 0.0
      %419 = vmatpush1.msra.mxu0 0.0
      %420 = vmatprep.subr.mxu0 0.0
      %421 = vmatpush1.msra.mxu0 0.0
      %422 = vmatprep.subr.mxu0 0.0
      %423 = vmatpush1.msra.mxu0 0.0
      %424 = vmatprep.subr.mxu0 0.0
      %425 = vmatpush1.msra.mxu0 0.0
      %426 = vmatprep.mubr.f32.mxu0 0.0
      %427 = vmatmul.mubr.f32.gmra.mrb[0].mxu0 %v346
      %v428 = vpop.f32.mrb[0].mxu0
      %v429 = vadd.f32 %v325, %v428
      %v430 = vpop.f32.mrb[0].mxu0
      %v431 = vadd.f32 %v325, %v430
      %432 = vmatprep.mubr.f32.mxu0 0.0
      %433 = vmatmul.mubr.f32.gmra.mrb[0].mxu0 %v349
      %v434 = vpop.f32.mrb[0].mxu0
      %v435 = vadd.f32 %v330, %v434
      %v436 = vpop.f32.mrb[0].mxu0
      %v437 = vadd.f32 %v330, %v436
      %438 = vmatprep.mubr.f32.mxu0 0.0
      %439 = vmatmul.mubr.f32.gmra.mrb[0].mxu0 %v352
      %v440 = vpop.f32.mrb[0].mxu0
      %v441 = vadd.f32 %v335, %v440
      %v442 = vpop.f32.mrb[0].mxu0
      %v443 = vadd.f32 %v335, %v442
      %444 = vmatprep.mubr.f32.mxu0 0.0
      %445 = vmatmul.mubr.f32.gmra.mrb[0].mxu0 %v355
      %v446 = vpop.f32.mrb[0].mxu0
      %v447 = vadd.f32 %v340, %v446
      %v448 = vpop.f32.mrb[0].mxu0
      %v449 = vadd.f32 %v340, %v448
      %450 = vdwg.mxu0
      %v451 = vmax.f32 %v429, 0.0
      %v452 = vmax.f32 %v431, 0.0
      %v453 = vmax.f32 %v435, 0.0
      %v454 = vmax.f32 %v437, 0.0
      %v455 = vmax.f32 %v441, 0.0
      %v456 = vmax.f32 %v443, 0.0
      %v457 = vmax.f32 %v447, 0.0
      %v458 = vmax.f32 %v449, 0.0
      %459 = vst [vmem:[%s297] sm:$0xff] %v451
      %460 = vst [vmem:[%s297 + $0x8] sm:$0xff] %v452
      %461 = vst [vmem:[%s297 + $0x10] sm:$0xff] %v453
      %462 = vst [vmem:[%s297 + $0x18] sm:$0xff] %v454
      %463 = vst [vmem:[%s297 + $0x20] sm:$0xff] %v455
      %464 = vst [vmem:[%s297 + $0x28] sm:$0xff] %v456
      %465 = vst [vmem:[%s297 + $0x30] sm:$0xff] %v457
      %466 = vst [vmem:[%s297 + $0x38] sm:$0xff] %v458
      %v467 = vld [vmem:[%s303] sm:$0xff]
      %v468 = vld [vmem:[%s303 + $0x8] sm:$0xff]
      %v469 = vld [vmem:[%s303 + $0x10] sm:$0xff]
      %v470 = vld [vmem:[%s303 + $0x18] sm:$0xff]
      %v471 = vadd.f32 %v451, %v452
      %472 = vadd.xlane.f32.xlu0 %v471
      %v473 = vpop.xlane.xlu0 %472
      %v474 = vadd.f32 %v453, %v454
      %475 = vadd.xlane.f32.xlu0 %v474
      %v476 = vpop.xlane.xlu0 %475
      %v477 = vadd.f32 %v455, %v456
      %478 = vadd.xlane.f32.xlu0 %v477
      %v479 = vpop.xlane.xlu0 %478
      %v480 = vadd.f32 %v457, %v458
      %481 = vadd.xlane.f32.xlu0 %v480
      %v482 = vpop.xlane.xlu0 %481
      %v483 = vadd.f32 %v467, %v473
      %v484 = vadd.f32 %v468, %v476
      %v485 = vadd.f32 %v469, %v479
      %v486 = vadd.f32 %v470, %v482
      %vm487 = vcmask 7168
      %488 = vst.msk [vmem:[%s303] sm:$0xff] %vm487, %v483
      %489 = vst.msk [vmem:[%s303 + $0x8] sm:$0xff] %vm487, %v484
      %490 = vst.msk [vmem:[%s303 + $0x10] sm:$0xff] %vm487, %v485
      %491 = vst.msk [vmem:[%s303 + $0x18] sm:$0xff] %vm487, %v486
      // Predicated region
      $region45: #{baseline_teacher_forward.1} parent=39 // pred_check
        %p492 = pneg %p304
      $region46: #{baseline_teacher_forward.1} parent=39 // pred_check_branch
        %494 = sbr.rel (%p492) target = $region48
      $region47: #{baseline_teacher_forward.1} parent=39 // pred_region
        %v495 = vld [vmem:[%s303] sm:$0xff]
        %v496 = vld [vmem:[%s303 + $0x8] sm:$0xff]
        %v497 = vld [vmem:[%s303 + $0x10] sm:$0xff]
        %v498 = vld [vmem:[%s303 + $0x18] sm:$0xff]
        %v499 = vld [vmem:[%s3] sm:$0xff]
        %v500 = vld [vmem:[%s3 + $0x8] sm:$0xff]
        %v501 = vld [vmem:[%s3 + $0x10] sm:$0xff]
        %v502 = vld [vmem:[%s3 + $0x18] sm:$0xff]
        %v503 = vmul.f32 %v495, %v499
        %v504 = vmul.f32 %v496, %v500
        %v505 = vmul.f32 %v497, %v501
        %v506 = vmul.f32 %v498, %v502
        %v507 = vld [vmem:[%s4] sm:$0xff]
        %v508 = vld [vmem:[%s4 + $0x8] sm:$0xff]
        %v509 = vld [vmem:[%s4 + $0x10] sm:$0xff]
        %v510 = vld [vmem:[%s4 + $0x18] sm:$0xff]
        %v511 = vadd.f32 %v503, %v507
        %v512 = vadd.f32 %v504, %v508
        %v513 = vadd.f32 %v505, %v509
        %v514 = vadd.f32 %v506, %v510
        %515 = vst.msk [vmem:[%s303] sm:$0xff] %vm487, %v511
        %516 = vst.msk [vmem:[%s303 + $0x8] sm:$0xff] %vm487, %v512
        %517 = vst.msk [vmem:[%s303 + $0x10] sm:$0xff] %vm487, %v513
        %518 = vst.msk [vmem:[%s303 + $0x18] sm:$0xff] %vm487, %v514
      $region48: #{baseline_teacher_forward.1} parent=39 // pred_fallthru
        _
      %s519 = smul.u32 2, %s23
      %p520 = scmp.lt.s32.totalorder %s22, 1
      %s521 = scalar_select %p520, %s22, 1
      %p522 = scmp.lt.s32.totalorder %s519, 1
      %s523 = scalar_select %p522, %s519, 1
      %s524 = smul.addr %s521, 8
      %s525 = sadd.s32 %s523, %s524
      %s526 = smul.addr %s525, 8
      %s527 = scalar_lea.vmem %s5, %s526
      %p528 = scmp.lt.s32.totalorder %s22, 1
      %s529 = scalar_select %p528, %s22, 1
      %s530 = smul.addr %s529, 4
      %s531 = smul.addr %s530, 8
      %s532 = scalar_lea.vmem %s6, %s531
      // Predicated region
      $region49: #{baseline_teacher_forward.1} parent=39 // pred_check
        %p533 = pneg %p162
      $region50: #{baseline_teacher_forward.1} parent=39 // pred_check_branch
        %535 = sbr.rel (%p533) target = $region52
      $region51: #{baseline_teacher_forward.1} parent=39 // pred_region
        %s536 = smul.u32 2, %s23
      $region52: #{baseline_teacher_forward.1} parent=39 // pred_fallthru
        _
      // Predicated region
      $region53: #{baseline_teacher_forward.1} parent=39 // pred_check
        %p537 = pneg %p188
      $region54: #{baseline_teacher_forward.1} parent=39 // pred_check_branch
        %539 = sbr.rel (%p537) target = $region56
      $region55: #{baseline_teacher_forward.1} parent=39 // pred_region
        _
      $region56: #{baseline_teacher_forward.1} parent=39 // pred_fallthru
        _
    $region40: #{baseline_teacher_forward.1} parent=5 // pred_fallthru
      _
    %p540 = scmp.le.s32.totalorder 2, %s13
    // Predicated region
    $region57: #{baseline_teacher_forward.1} parent=5 // pred_check
      %p541 = pneg %p540
    $region58: #{baseline_teacher_forward.1} parent=5 // pred_check_branch
      %543 = sbr.rel (%p541) target = $region60
    $region59: #{baseline_teacher_forward.1} parent=5 // pred_region
      %s544 = ssub.s32 %s13, 2
      // Predicated region
      $region61: #{baseline_teacher_forward.1} parent=59 // pred_check
        %p545 = pneg %p168
      $region62: #{baseline_teacher_forward.1} parent=59 // pred_check_branch
        %547 = sbr.rel (%p545) target = $region64
      $region63: #{baseline_teacher_forward.1} parent=59 // pred_region
        %s548 = smul.u32 2, %s25
        %p549 = scmp.lt.s32.totalorder %s24, 1
        %s550 = scalar_select %p549, %s24, 1
        %p551 = scmp.lt.s32.totalorder %s548, 1
        %s552 = scalar_select %p551, %s548, 1
        %s553 = smul.addr %s550, 8
        %s554 = sadd.s32 %s552, %s553
        %s555 = smul.addr %s554, 8
        %s556 = scalar_lea.vmem %s5, %s555
      $region64: #{baseline_teacher_forward.1} parent=59 // pred_fallthru
        _
      // Predicated region
      $region65: #{baseline_teacher_forward.1} parent=59 // pred_check
        %p557 = pneg %p194
      $region66: #{baseline_teacher_forward.1} parent=59 // pred_check_branch
        %559 = sbr.rel (%p557) target = $region68
      $region67: #{baseline_teacher_forward.1} parent=59 // pred_region
        %p560 = scmp.lt.s32.totalorder %s24, 1
        %s561 = scalar_select %p560, %s24, 1
        %s562 = smul.addr %s561, 4
        %s563 = smul.addr %s562, 8
        %s564 = scalar_lea.vmem %s6, %s563
      $region68: #{baseline_teacher_forward.1} parent=59 // pred_fallthru
        _
    $region60: #{baseline_teacher_forward.1} parent=5 // pred_fallthru
      _
  $region6: #{baseline_teacher_forward.1} parent=0 // loop_footer
    %s17 = sadd.s32 1, %s13
  $region7: #{baseline_teacher_forward.1} parent=0 // loop_footer_branch
    %12 = sbr.rel target = $region3
  $region8: #{baseline_teacher_forward.1} parent=0 // loop_exit
    _

</llo_original>
